<compile_context>
chip_gen: v7x
topology: tpu7x:2x2x1
jax: 0.10.0
libtpu: 0.0.40
codegen_flags: <defaults>
</compile_context>

<pallas_src>
import math

import jax
import jax.numpy as jnp
from jax.experimental import pallas as pl
from jax.experimental.pallas import tpu as pltpu

F_PAD = 16          # hidden feature dim padded to 16 sublanes (real widths 10/11)
BATCH_TILE = 2048   # batch lanes per grid step (multiple of 128)

LAYER_DIMS = [(1, 11), (11, 11), (11, 11), (11, 10), (10, 10), (10, 1)]


def _round_up(a, b):
    return ((a + b - 1) // b) * b


def _sigmoid(x):
    # Single EUP op (tanh) per element instead of exp + full-precision divide.
    return 0.5 * jnp.tanh(0.5 * x) + 0.5


def _mlp_kernel(x_ref, w1_ref, wt_ref, b_ref, o_ref):
    """All six dense layers fused.  Batch on lanes, features on sublanes."""
    x = x_ref[...]                                   # (1, TB) lane-dense load

    # layer 1 (in-dim = 1): broadcast multiply-add on the VPU.
    h = _sigmoid(w1_ref[...] * x + b_ref[0])         # (16,1)*(1,TB) -> (16, TB)

    # layers 2..5: (16,16) @ (16,TB) MXU matmuls, f32 accumulation, sigmoid on
    # 16 sublane rows only (padded rows' weights are zero -> no contamination).
    for k in range(4):
        h = _sigmoid(jnp.dot(wt_ref[k], h, preferred_element_type=jnp.float32)
                     + b_ref[k + 1])

    # layer 6: same matmul shape, no activation; only row 0 is the real output.
    y = jnp.dot(wt_ref[4], h, preferred_element_type=jnp.float32) + b_ref[5]
    o_ref[...] = y[0:1, :].astype(o_ref.dtype)       # (1, TB) lane-dense store


def _pack_params(params):
    """Pack six unpadded (w, b) pairs into transposed, sublane-padded operands."""
    w1, b1 = params[0]                                # (1, 11), (11,)
    w1_col = jnp.zeros((F_PAD, 1), jnp.float32).at[:w1.shape[1], 0].set(w1[0])

    wT = jnp.zeros((5, F_PAD, F_PAD), jnp.float32)    # layers 2..6, transposed
    b_all = jnp.zeros((6, F_PAD, 1), jnp.float32)
    b_all = b_all.at[0, :b1.shape[0], 0].set(b1)
    for k in range(5):
        w, b = params[k + 1]                          # (din, dout)
        din, dout = w.shape
        wT = wT.at[k, :dout, :din].set(w.T)
        b_all = b_all.at[k + 1, :dout, 0].set(b)
    return w1_col, wT, b_all


@jax.jit
def model2_forward(x, params):
    """x: (N, 1) float32.  params: list of 6 (w, b) pairs (unpadded).  -> (N, 1)."""
    n = x.shape[0]

    tb = BATCH_TILE
    if _round_up(n, 128) < 2 * tb:
        # Small / moderate N: shrink the tile so the grid still has >= 2 steps
        # (keeps both v7x TensorCores fed); tile stays a multiple of 128 lanes.
        tb = max(128, _round_up((n + 1) // 2, 128))
    n_pad = _round_up(max(n, 1), tb)
    grid = (n_pad // tb,)

    # (N, 1) -> lane-dense (1, N) row (free reshape); pad only the lane dim.
    x_row = jnp.pad(x.astype(jnp.float32).reshape(1, n), ((0, 0), (0, n_pad - n)))
    w1_col, wT, b_all = _pack_params(params)

    in_specs = [
        pl.BlockSpec((1, tb), lambda i: (0, i)),                # x batch tile
        pl.BlockSpec((F_PAD, 1), lambda i: (0, 0)),             # layer-1 weight col
        pl.BlockSpec((5, F_PAD, F_PAD), lambda i: (0, 0, 0)),   # transposed W2..W6
        pl.BlockSpec((6, F_PAD, 1), lambda i: (0, 0, 0)),       # bias columns
    ]

    out_row = pl.pallas_call(
        _mlp_kernel,
        out_shape=jax.ShapeDtypeStruct((1, n_pad), jnp.float32),
        grid_spec=pltpu.PrefetchScalarGridSpec(
            num_scalar_prefetch=0,
            grid=grid,
            in_specs=in_specs,
            out_specs=pl.BlockSpec((1, tb), lambda i: (0, i)),
        ),
        compiler_params=pltpu.CompilerParams(
            dimension_semantics=("parallel",)),
    )(x_row, w1_col, wT, b_all)

    return out_row[0, :n].reshape(n, 1)


def init_params(key):
    """Deterministic init matching nn.Linear's U(-1/sqrt(fan_in), 1/sqrt(fan_in))."""
    params = []
    for (din, dout) in LAYER_DIMS:
        key, kw, kb = jax.random.split(key, 3)
        bound = 1.0 / math.sqrt(din)
        w = jax.random.uniform(kw, (din, dout), jnp.float32, -bound, bound)
        b = jax.random.uniform(kb, (dout,), jnp.float32, -bound, bound)
        params.append((w, b))
    return params


def reference_forward(x, params):
    """Pure-JAX reference for sanity checking (full-precision matmuls)."""
    h = x
    for i, (w, b) in enumerate(params):
        h = jnp.dot(h, w, precision=jax.lax.Precision.HIGHEST) + b
        if i < 5:
            h = jax.nn.sigmoid(h)
    return h


if __name__ == "__main__":
    key = jax.random.PRNGKey(0)
    kx, kp = jax.random.split(key)
    params = init_params(kp)

    # Exercise three wrapper paths: single-tile tiny batch, shrunken-tile
    # 2-step grid (v7x megacore), and the full 2048-lane tile with ragged tail.
    for N in (7, 1000, 5000):
        x = jax.random.normal(jax.random.fold_in(kx, N), (N, 1), jnp.float32)
        out = jax.block_until_ready(model2_forward(x, params))
        ref = reference_forward(x, params)
        assert out.shape == (N, 1), out.shape
        err = float(jnp.max(jnp.abs(out - ref)))
        assert err < 5e-4, err

    print("KERNEL_OK")
</pallas_src>

<mosaic_0001>
module attributes {stable_mosaic.version = 11 : i64} {
  func.func @_mlp_kernel(%arg0: i32, %arg1: memref<1x128xf32, #tpu.memory_space<vmem>>, %arg2: memref<16x1xf32, #tpu.memory_space<vmem>>, %arg3: memref<5x16x16xf32, #tpu.memory_space<vmem>>, %arg4: memref<6x16x1xf32, #tpu.memory_space<vmem>>, %arg5: memref<1x128xf32, #tpu.memory_space<vmem>>) attributes {dimension_semantics = [#tpu.dimension_semantics<parallel>], iteration_bounds = array<i64: 1>, scalar_prefetch = 0 : i64, scratch_operands = 0 : i64, tpu.core_type = #tpu.core_type<tc>, window_params = [{transform_indices = @transform_0, window_bounds = array<i64: 1, 128>}, {pipeline_mode = #tpu.pipeline_mode<synchronous>, transform_indices = @transform_1, window_bounds = array<i64: 16, 1>}, {pipeline_mode = #tpu.pipeline_mode<synchronous>, transform_indices = @transform_2, window_bounds = array<i64: 5, 16, 16>}, {pipeline_mode = #tpu.pipeline_mode<synchronous>, transform_indices = @transform_3, window_bounds = array<i64: 6, 16, 1>}, {transform_indices = @transform_4, window_bounds = array<i64: 1, 128>}]} {
    %c0 = arith.constant 0 : index
    %c0_0 = arith.constant 0 : index
    %0 = vector.load %arg1[%c0, %c0_0] : memref<1x128xf32, #tpu.memory_space<vmem>>, vector<1x128xf32>
    %c0_1 = arith.constant 0 : index
    %c0_2 = arith.constant 0 : index
    %1 = vector.load %arg2[%c0_1, %c0_2] : memref<16x1xf32, #tpu.memory_space<vmem>>, vector<16x1xf32>
    %2 = vector.broadcast %1 : vector<16x1xf32> to vector<16x128xf32>
    %3 = vector.broadcast %0 : vector<1x128xf32> to vector<16x128xf32>
    %4 = arith.mulf %2, %3 : vector<16x128xf32>
    %c0_3 = arith.constant 0 : index
    %c0_4 = arith.constant 0 : index
    %c0_5 = arith.constant 0 : index
    %5 = vector.load %arg4[%c0_3, %c0_4, %c0_5] : memref<6x16x1xf32, #tpu.memory_space<vmem>>, vector<1x16x1xf32>
    %6 = vector.shape_cast %5 : vector<1x16x1xf32> to vector<16x1xf32>
    %7 = vector.broadcast %6 : vector<16x1xf32> to vector<16x128xf32>
    %8 = arith.addf %4, %7 : vector<16x128xf32>
    %cst = arith.constant 5.000000e-01 : f32
    %9 = vector.broadcast %cst : f32 to vector<16x128xf32>
    %10 = arith.mulf %9, %8 : vector<16x128xf32>
    %11 = math.tanh %10 : vector<16x128xf32>
    %cst_6 = arith.constant 5.000000e-01 : f32
    %12 = vector.broadcast %cst_6 : f32 to vector<16x128xf32>
    %13 = arith.mulf %12, %11 : vector<16x128xf32>
    %cst_7 = arith.constant 5.000000e-01 : f32
    %14 = vector.broadcast %cst_7 : f32 to vector<16x128xf32>
    %15 = arith.addf %13, %14 : vector<16x128xf32>
    %c0_8 = arith.constant 0 : index
    %c0_9 = arith.constant 0 : index
    %c0_10 = arith.constant 0 : index
    %16 = vector.load %arg3[%c0_8, %c0_9, %c0_10] : memref<5x16x16xf32, #tpu.memory_space<vmem>>, vector<1x16x16xf32>
    %17 = vector.shape_cast %16 : vector<1x16x16xf32> to vector<16x16xf32>
    %cst_11 = arith.constant dense<0.000000e+00> : vector<16x128xf32>
    %18 = tpu.matmul %17, %15, %cst_11 {dimension_numbers = #tpu.dot_dimension_numbers<[1], [0], [0], [1], [0, 0, 1, 1], [], []>} : vector<16x16xf32>, vector<16x128xf32>, vector<16x128xf32> -> vector<16x128xf32>
    %c1 = arith.constant 1 : index
    %c0_12 = arith.constant 0 : index
    %c0_13 = arith.constant 0 : index
    %19 = vector.load %arg4[%c1, %c0_12, %c0_13] : memref<6x16x1xf32, #tpu.memory_space<vmem>>, vector<1x16x1xf32>
    %20 = vector.shape_cast %19 : vector<1x16x1xf32> to vector<16x1xf32>
    %21 = vector.broadcast %20 : vector<16x1xf32> to vector<16x128xf32>
    %22 = arith.addf %18, %21 : vector<16x128xf32>
    %cst_14 = arith.constant 5.000000e-01 : f32
    %23 = vector.broadcast %cst_14 : f32 to vector<16x128xf32>
    %24 = arith.mulf %23, %22 : vector<16x128xf32>
    %25 = math.tanh %24 : vector<16x128xf32>
    %cst_15 = arith.constant 5.000000e-01 : f32
    %26 = vector.broadcast %cst_15 : f32 to vector<16x128xf32>
    %27 = arith.mulf %26, %25 : vector<16x128xf32>
    %cst_16 = arith.constant 5.000000e-01 : f32
    %28 = vector.broadcast %cst_16 : f32 to vector<16x128xf32>
    %29 = arith.addf %27, %28 : vector<16x128xf32>
    %c1_17 = arith.constant 1 : index
    %c0_18 = arith.constant 0 : index
    %c0_19 = arith.constant 0 : index
    %30 = vector.load %arg3[%c1_17, %c0_18, %c0_19] : memref<5x16x16xf32, #tpu.memory_space<vmem>>, vector<1x16x16xf32>
    %31 = vector.shape_cast %30 : vector<1x16x16xf32> to vector<16x16xf32>
    %cst_20 = arith.constant dense<0.000000e+00> : vector<16x128xf32>
    %32 = tpu.matmul %31, %29, %cst_20 {dimension_numbers = #tpu.dot_dimension_numbers<[1], [0], [0], [1], [0, 0, 1, 1], [], []>} : vector<16x16xf32>, vector<16x128xf32>, vector<16x128xf32> -> vector<16x128xf32>
    %c2 = arith.constant 2 : index
    %c0_21 = arith.constant 0 : index
    %c0_22 = arith.constant 0 : index
    %33 = vector.load %arg4[%c2, %c0_21, %c0_22] : memref<6x16x1xf32, #tpu.memory_space<vmem>>, vector<1x16x1xf32>
    %34 = vector.shape_cast %33 : vector<1x16x1xf32> to vector<16x1xf32>
    %35 = vector.broadcast %34 : vector<16x1xf32> to vector<16x128xf32>
    %36 = arith.addf %32, %35 : vector<16x128xf32>
    %cst_23 = arith.constant 5.000000e-01 : f32
    %37 = vector.broadcast %cst_23 : f32 to vector<16x128xf32>
    %38 = arith.mulf %37, %36 : vector<16x128xf32>
    %39 = math.tanh %38 : vector<16x128xf32>
    %cst_24 = arith.constant 5.000000e-01 : f32
    %40 = vector.broadcast %cst_24 : f32 to vector<16x128xf32>
    %41 = arith.mulf %40, %39 : vector<16x128xf32>
    %cst_25 = arith.constant 5.000000e-01 : f32
    %42 = vector.broadcast %cst_25 : f32 to vector<16x128xf32>
    %43 = arith.addf %41, %42 : vector<16x128xf32>
    %c2_26 = arith.constant 2 : index
    %c0_27 = arith.constant 0 : index
    %c0_28 = arith.constant 0 : index
    %44 = vector.load %arg3[%c2_26, %c0_27, %c0_28] : memref<5x16x16xf32, #tpu.memory_space<vmem>>, vector<1x16x16xf32>
    %45 = vector.shape_cast %44 : vector<1x16x16xf32> to vector<16x16xf32>
    %cst_29 = arith.constant dense<0.000000e+00> : vector<16x128xf32>
    %46 = tpu.matmul %45, %43, %cst_29 {dimension_numbers = #tpu.dot_dimension_numbers<[1], [0], [0], [1], [0, 0, 1, 1], [], []>} : vector<16x16xf32>, vector<16x128xf32>, vector<16x128xf32> -> vector<16x128xf32>
    %c3 = arith.constant 3 : index
    %c0_30 = arith.constant 0 : index
    %c0_31 = arith.constant 0 : index
    %47 = vector.load %arg4[%c3, %c0_30, %c0_31] : memref<6x16x1xf32, #tpu.memory_space<vmem>>, vector<1x16x1xf32>
    %48 = vector.shape_cast %47 : vector<1x16x1xf32> to vector<16x1xf32>
    %49 = vector.broadcast %48 : vector<16x1xf32> to vector<16x128xf32>
    %50 = arith.addf %46, %49 : vector<16x128xf32>
    %cst_32 = arith.constant 5.000000e-01 : f32
    %51 = vector.broadcast %cst_32 : f32 to vector<16x128xf32>
    %52 = arith.mulf %51, %50 : vector<16x128xf32>
    %53 = math.tanh %52 : vector<16x128xf32>
    %cst_33 = arith.constant 5.000000e-01 : f32
    %54 = vector.broadcast %cst_33 : f32 to vector<16x128xf32>
    %55 = arith.mulf %54, %53 : vector<16x128xf32>
    %cst_34 = arith.constant 5.000000e-01 : f32
    %56 = vector.broadcast %cst_34 : f32 to vector<16x128xf32>
    %57 = arith.addf %55, %56 : vector<16x128xf32>
    %c3_35 = arith.constant 3 : index
    %c0_36 = arith.constant 0 : index
    %c0_37 = arith.constant 0 : index
    %58 = vector.load %arg3[%c3_35, %c0_36, %c0_37] : memref<5x16x16xf32, #tpu.memory_space<vmem>>, vector<1x16x16xf32>
    %59 = vector.shape_cast %58 : vector<1x16x16xf32> to vector<16x16xf32>
    %cst_38 = arith.constant dense<0.000000e+00> : vector<16x128xf32>
    %60 = tpu.matmul %59, %57, %cst_38 {dimension_numbers = #tpu.dot_dimension_numbers<[1], [0], [0], [1], [0, 0, 1, 1], [], []>} : vector<16x16xf32>, vector<16x128xf32>, vector<16x128xf32> -> vector<16x128xf32>
    %c4 = arith.constant 4 : index
    %c0_39 = arith.constant 0 : index
    %c0_40 = arith.constant 0 : index
    %61 = vector.load %arg4[%c4, %c0_39, %c0_40] : memref<6x16x1xf32, #tpu.memory_space<vmem>>, vector<1x16x1xf32>
    %62 = vector.shape_cast %61 : vector<1x16x1xf32> to vector<16x1xf32>
    %63 = vector.broadcast %62 : vector<16x1xf32> to vector<16x128xf32>
    %64 = arith.addf %60, %63 : vector<16x128xf32>
    %cst_41 = arith.constant 5.000000e-01 : f32
    %65 = vector.broadcast %cst_41 : f32 to vector<16x128xf32>
    %66 = arith.mulf %65, %64 : vector<16x128xf32>
    %67 = math.tanh %66 : vector<16x128xf32>
    %cst_42 = arith.constant 5.000000e-01 : f32
    %68 = vector.broadcast %cst_42 : f32 to vector<16x128xf32>
    %69 = arith.mulf %68, %67 : vector<16x128xf32>
    %cst_43 = arith.constant 5.000000e-01 : f32
    %70 = vector.broadcast %cst_43 : f32 to vector<16x128xf32>
    %71 = arith.addf %69, %70 : vector<16x128xf32>
    %c4_44 = arith.constant 4 : index
    %c0_45 = arith.constant 0 : index
    %c0_46 = arith.constant 0 : index
    %72 = vector.load %arg3[%c4_44, %c0_45, %c0_46] : memref<5x16x16xf32, #tpu.memory_space<vmem>>, vector<1x16x16xf32>
    %73 = vector.shape_cast %72 : vector<1x16x16xf32> to vector<16x16xf32>
    %cst_47 = arith.constant dense<0.000000e+00> : vector<16x128xf32>
    %74 = tpu.matmul %73, %71, %cst_47 {dimension_numbers = #tpu.dot_dimension_numbers<[1], [0], [0], [1], [0, 0, 1, 1], [], []>} : vector<16x16xf32>, vector<16x128xf32>, vector<16x128xf32> -> vector<16x128xf32>
    %c5 = arith.constant 5 : index
    %c0_48 = arith.constant 0 : index
    %c0_49 = arith.constant 0 : index
    %75 = vector.load %arg4[%c5, %c0_48, %c0_49] : memref<6x16x1xf32, #tpu.memory_space<vmem>>, vector<1x16x1xf32>
    %76 = vector.shape_cast %75 : vector<1x16x1xf32> to vector<16x1xf32>
    %77 = vector.broadcast %76 : vector<16x1xf32> to vector<16x128xf32>
    %78 = arith.addf %74, %77 : vector<16x128xf32>
    %79 = vector.extract_strided_slice %78 {offsets = [0, 0], sizes = [1, 128], strides = [1, 1]} : vector<16x128xf32> to vector<1x128xf32>
    %c0_50 = arith.constant 0 : index
    %c0_51 = arith.constant 0 : index
    %80 = vector.load %arg5[%c0_50, %c0_51] : memref<1x128xf32, #tpu.memory_space<vmem>>, vector<1x128xf32>
    tpu.vector_store %arg5[%c0_50, %c0_51], %79 {strides = array<i32>} : memref<1x128xf32, #tpu.memory_space<vmem>>, vector<1x128xf32>,
    return
  }
  func.func @transform_0(%arg0: i32) -> (i32, i32) {
    %c0_i32 = arith.constant 0 : i32
    %c0_i32_0 = arith.constant 0 : i32
    return %c0_i32, %arg0 : i32, i32
  }
  func.func @transform_1(%arg0: i32) -> (i32, i32) {
    %c0_i32 = arith.constant 0 : i32
    %c0_i32_0 = arith.constant 0 : i32
    %c0_i32_1 = arith.constant 0 : i32
    return %c0_i32, %c0_i32_0 : i32, i32
  }
  func.func @transform_2(%arg0: i32) -> (i32, i32, i32) {
    %c0_i32 = arith.constant 0 : i32
    %c0_i32_0 = arith.constant 0 : i32
    %c0_i32_1 = arith.constant 0 : i32
    %c0_i32_2 = arith.constant 0 : i32
    return %c0_i32, %c0_i32_0, %c0_i32_1 : i32, i32, i32
  }
  func.func @transform_3(%arg0: i32) -> (i32, i32, i32) {
    %c0_i32 = arith.constant 0 : i32
    %c0_i32_0 = arith.constant 0 : i32
    %c0_i32_1 = arith.constant 0 : i32
    %c0_i32_2 = arith.constant 0 : i32
    return %c0_i32, %c0_i32_0, %c0_i32_1 : i32, i32, i32
  }
  func.func @transform_4(%arg0: i32) -> (i32, i32) {
    %c0_i32 = arith.constant 0 : i32
    %c0_i32_0 = arith.constant 0 : i32
    return %c0_i32, %arg0 : i32, i32
  }
}

</mosaic_0001>

<llo_original>
// kernel: model2_forward.1
$region0: #{model2_forward.1}
  #allocation0 [shape = 'u32[]', space=smem, size = 0x4, offset = 0x4, fixed_abs, tag = 'smem constant byte address 0x4 - core index']
  #allocation1 [shape = 'u32[144,128]{1,0:T(1,128)}', space=vmem, size = 0x12000, scoped, tag = 'internal scratch']
  %s0 = inlined_call_operand.vmem [shape: f32[1,128], index: 0, kind: input, shape index: {}]
  %s1 = inlined_call_operand.vmem [shape: f32[16,1], index: 1, kind: input, shape index: {}]
  %s2 = inlined_call_operand.vmem [shape: f32[5,16,16], index: 2, kind: input, shape index: {}]
  %s3 = inlined_call_operand.vmem [shape: f32[6,16,1], index: 3, kind: input, shape index: {}]
  %s4 = inlined_call_operand.vmem [shape: f32[1,128], index: 4, kind: output, shape index: {}]
  %s5 = sld [smem:[#allocation0]]
  $region26: #{model2_forward.1} parent=0
    _
  %s7 = ssub.s32 1, %s5
  %s8 = scalar_select 0, %s7, %s5
  // Predicated region
  $region2: #{model2_forward.1} parent=0 // pred_check
    _
  $region3: #{model2_forward.1} parent=0 // pred_check_branch
    %10 = sbr.rel (0) target = $region5
  $region4: #{model2_forward.1} parent=0 // pred_region
    _
  $region5: #{model2_forward.1} parent=0 // pred_fallthru
    _
  // Predicated region
  $region6: #{model2_forward.1} parent=0 // pred_check
    _
  $region7: #{model2_forward.1} parent=0 // pred_check_branch
    %12 = sbr.rel (0) target = $region9
  $region8: #{model2_forward.1} parent=0 // pred_region
    _
  $region9: #{model2_forward.1} parent=0 // pred_fallthru
    _
  // Predicated region
  $region10: #{model2_forward.1} parent=0 // pred_check
    _
  $region11: #{model2_forward.1} parent=0 // pred_check_branch
    %14 = sbr.rel (0) target = $region13
  $region12: #{model2_forward.1} parent=0 // pred_region
    _
  $region13: #{model2_forward.1} parent=0 // pred_fallthru
    _
  // Predicated region
  $region14: #{model2_forward.1} parent=0 // pred_check
    _
  $region15: #{model2_forward.1} parent=0 // pred_check_branch
    %16 = sbr.rel (0) target = $region17
  $region16: #{model2_forward.1} parent=0 // pred_region
    _
  $region17: #{model2_forward.1} parent=0 // pred_fallthru
    _
  %v17 = vld [vmem:[%s0] sm:$0x1]
  %v18 = vld [vmem:[%s1] sm:$0xff]
  %v19 = vld [vmem:[%s1 + $0x8] sm:$0xff]
  %21 = vset.pattern.permute.xlu0 0
  %22 = vperm.xlu0 %21, %v18
  %v23 = vpop.permute.xlu0 %22
  %26 = vset.pattern.permute.xlu0 0
  %27 = vperm.xlu0 %26, %v19
  %v28 = vpop.permute.xlu0 %27
  %v31 = vlaneseq
  %v32 = vshrl.u32 %v31, 7
  %v33 = vsub.s32 0, %v32
  %v34 = vrot.slane %v17, %v33
  %v36 = vmul.f32 %v23, %v34
  %v37 = vmul.f32 %v28, %v34
  %v38 = vld [vmem:[%s3] sm:$0xff]
  %v39 = vld [vmem:[%s3 + $0x8] sm:$0xff]
  %41 = vset.pattern.permute.xlu0 0
  %42 = vperm.xlu0 %41, %v38
  %v43 = vpop.permute.xlu0 %42
  %46 = vset.pattern.permute.xlu0 0
  %47 = vperm.xlu0 %46, %v39
  %v48 = vpop.permute.xlu0 %47
  %v50 = vadd.f32 %v36, %v43
  %v51 = vadd.f32 %v37, %v48
  %v52 = vmul.f32 %v50, 0.5
  %v53 = vmul.f32 %v51, 0.5
  %v54 = vtanh.pop %v52
  %v55 = vtanh.pop %v53
  %v56 = vmul.f32 %v54, 0.5
  %v57 = vmul.f32 %v55, 0.5
  %v58 = vadd.f32 %v56, 0.5
  %v59 = vadd.f32 %v57, 0.5
  %v60 = vld [vmem:[%s2] sm:$0xff]
  %v61 = vld [vmem:[%s2 + $0x8] sm:$0xff]
  %s62 = scalar_lea.vmem %s3, 16
  %v63 = vld [vmem:[%s62] sm:$0xff]
  %v64 = vld [vmem:[%s62 + $0x8] sm:$0xff]
  %66 = vset.pattern.permute.xlu0 0
  %67 = vperm.xlu0 %66, %v63
  %v68 = vpop.permute.xlu0 %67
  %71 = vset.pattern.permute.xlu0 0
  %72 = vperm.xlu0 %71, %v64
  %v73 = vpop.permute.xlu0 %72
  %vm75 = vcmask 130048
  %v77 = vsel %vm75, %v60, 0
  %v80 = vsel %vm75, %v61, 0
  %82 = vmatprep.subr.mxu0 0.0
  %83 = vmatpush1.msra.mxu0 %v58
  %84 = vmatprep.subr.mxu0 0.0
  %85 = vmatpush1.msra.mxu0 %v59
  %86 = vmatprep.subr.mxu0 0.0
  %87 = vmatpush1.msra.mxu0 0.0
  %88 = vmatprep.subr.mxu0 0.0
  %89 = vmatpush1.msra.mxu0 0.0
  %90 = vmatprep.subr.mxu0 0.0
  %91 = vmatpush1.msra.mxu0 0.0
  %92 = vmatprep.subr.mxu0 0.0
  %93 = vmatpush1.msra.mxu0 0.0
  %94 = vmatprep.subr.mxu0 0.0
  %95 = vmatpush1.msra.mxu0 0.0
  %96 = vmatprep.subr.mxu0 0.0
  %97 = vmatpush1.msra.mxu0 0.0
  %98 = vmatprep.subr.mxu0 0.0
  %99 = vmatpush1.msra.mxu0 0.0
  %100 = vmatprep.subr.mxu0 0.0
  %101 = vmatpush1.msra.mxu0 0.0
  %102 = vmatprep.subr.mxu0 0.0
  %103 = vmatpush1.msra.mxu0 0.0
  %104 = vmatprep.subr.mxu0 0.0
  %105 = vmatpush1.msra.mxu0 0.0
  %106 = vmatprep.subr.mxu0 0.0
  %107 = vmatpush1.msra.mxu0 0.0
  %108 = vmatprep.subr.mxu0 0.0
  %109 = vmatpush1.msra.mxu0 0.0
  %110 = vmatprep.subr.mxu0 0.0
  %111 = vmatpush1.msra.mxu0 0.0
  %112 = vmatprep.subr.mxu0 0.0
  %113 = vmatpush1.msra.mxu0 0.0
  %114 = vmatprep.subr.mxu0 0.0
  %115 = vmatpush1.msra.mxu0 0.0
  %116 = vmatprep.subr.mxu0 0.0
  %117 = vmatpush1.msra.mxu0 0.0
  %118 = vmatprep.subr.mxu0 0.0
  %119 = vmatpush1.msra.mxu0 0.0
  %120 = vmatprep.subr.mxu0 0.0
  %121 = vmatpush1.msra.mxu0 0.0
  %122 = vmatprep.subr.mxu0 0.0
  %123 = vmatpush1.msra.mxu0 0.0
  %124 = vmatprep.subr.mxu0 0.0
  %125 = vmatpush1.msra.mxu0 0.0
  %126 = vmatprep.subr.mxu0 0.0
  %127 = vmatpush1.msra.mxu0 0.0
  %128 = vmatprep.subr.mxu0 0.0
  %129 = vmatpush1.msra.mxu0 0.0
  %130 = vmatprep.subr.mxu0 0.0
  %131 = vmatpush1.msra.mxu0 0.0
  %132 = vmatprep.subr.mxu0 0.0
  %133 = vmatpush1.msra.mxu0 0.0
  %134 = vmatprep.subr.mxu0 0.0
  %135 = vmatpush1.msra.mxu0 0.0
  %136 = vmatprep.subr.mxu0 0.0
  %137 = vmatpush1.msra.mxu0 0.0
  %138 = vmatprep.subr.mxu0 0.0
  %139 = vmatpush1.msra.mxu0 0.0
  %140 = vmatprep.subr.mxu0 0.0
  %141 = vmatpush1.msra.mxu0 0.0
  %142 = vmatprep.subr.mxu0 0.0
  %143 = vmatpush1.msra.mxu0 0.0
  %144 = vmatprep.subr.mxu0 0.0
  %145 = vmatpush1.msra.mxu0 0.0
  %146 = vmatprep.mubr.f32.mxu0 0.0
  %147 = vmatmul.mubr.f32.gmra.mrb[0].mxu0 %v77
  %v148 = vpop.f32.mrb[0].mxu0
  %v149 = vadd.f32 %v68, %v148
  %v150 = vpop.f32.mrb[0].mxu0
  %151 = vmatprep.mubr.f32.mxu0 0.0
  %152 = vmatmul.mubr.f32.gmra.mrb[0].mxu0 %v80
  %v153 = vpop.f32.mrb[0].mxu0
  %v154 = vadd.f32 %v73, %v153
  %v155 = vpop.f32.mrb[0].mxu0
  %156 = vdwg.mxu0
  %v157 = vmul.f32 %v149, 0.5
  %v158 = vmul.f32 %v154, 0.5
  %v159 = vtanh.pop %v157
  %v160 = vtanh.pop %v158
  %v161 = vmul.f32 %v159, 0.5
  %v162 = vmul.f32 %v160, 0.5
  %v163 = vadd.f32 %v161, 0.5
  %v164 = vadd.f32 %v162, 0.5
  %s165 = scalar_lea.vmem %s2, 16
  %v166 = vld [vmem:[%s165] sm:$0xff]
  %v167 = vld [vmem:[%s165 + $0x8] sm:$0xff]
  %s168 = scalar_lea.vmem %s3, 32
  %v169 = vld [vmem:[%s168] sm:$0xff]
  %v170 = vld [vmem:[%s168 + $0x8] sm:$0xff]
  %172 = vset.pattern.permute.xlu0 0
  %173 = vperm.xlu0 %172, %v169
  %v174 = vpop.permute.xlu0 %173
  %177 = vset.pattern.permute.xlu0 0
  %178 = vperm.xlu0 %177, %v170
  %v179 = vpop.permute.xlu0 %178
  %v182 = vsel %vm75, %v166, 0
  %v185 = vsel %vm75, %v167, 0
  %187 = vmatprep.subr.mxu0 0.0
  %188 = vmatpush1.msra.mxu0 %v163
  %189 = vmatprep.subr.mxu0 0.0
  %190 = vmatpush1.msra.mxu0 %v164
  %191 = vmatprep.subr.mxu0 0.0
  %192 = vmatpush1.msra.mxu0 0.0
  %193 = vmatprep.subr.mxu0 0.0
  %194 = vmatpush1.msra.mxu0 0.0
  %195 = vmatprep.subr.mxu0 0.0
  %196 = vmatpush1.msra.mxu0 0.0
  %197 = vmatprep.subr.mxu0 0.0
  %198 = vmatpush1.msra.mxu0 0.0
  %199 = vmatprep.subr.mxu0 0.0
  %200 = vmatpush1.msra.mxu0 0.0
  %201 = vmatprep.subr.mxu0 0.0
  %202 = vmatpush1.msra.mxu0 0.0
  %203 = vmatprep.subr.mxu0 0.0
  %204 = vmatpush1.msra.mxu0 0.0
  %205 = vmatprep.subr.mxu0 0.0
  %206 = vmatpush1.msra.mxu0 0.0
  %207 = vmatprep.subr.mxu0 0.0
  %208 = vmatpush1.msra.mxu0 0.0
  %209 = vmatprep.subr.mxu0 0.0
  %210 = vmatpush1.msra.mxu0 0.0
  %211 = vmatprep.subr.mxu0 0.0
  %212 = vmatpush1.msra.mxu0 0.0
  %213 = vmatprep.subr.mxu0 0.0
  %214 = vmatpush1.msra.mxu0 0.0
  %215 = vmatprep.subr.mxu0 0.0
  %216 = vmatpush1.msra.mxu0 0.0
  %217 = vmatprep.subr.mxu0 0.0
  %218 = vmatpush1.msra.mxu0 0.0
  %219 = vmatprep.subr.mxu0 0.0
  %220 = vmatpush1.msra.mxu0 0.0
  %221 = vmatprep.subr.mxu0 0.0
  %222 = vmatpush1.msra.mxu0 0.0
  %223 = vmatprep.subr.mxu0 0.0
  %224 = vmatpush1.msra.mxu0 0.0
  %225 = vmatprep.subr.mxu0 0.0
  %226 = vmatpush1.msra.mxu0 0.0
  %227 = vmatprep.subr.mxu0 0.0
  %228 = vmatpush1.msra.mxu0 0.0
  %229 = vmatprep.subr.mxu0 0.0
  %230 = vmatpush1.msra.mxu0 0.0
  %231 = vmatprep.subr.mxu0 0.0
  %232 = vmatpush1.msra.mxu0 0.0
  %233 = vmatprep.subr.mxu0 0.0
  %234 = vmatpush1.msra.mxu0 0.0
  %235 = vmatprep.subr.mxu0 0.0
  %236 = vmatpush1.msra.mxu0 0.0
  %237 = vmatprep.subr.mxu0 0.0
  %238 = vmatpush1.msra.mxu0 0.0
  %239 = vmatprep.subr.mxu0 0.0
  %240 = vmatpush1.msra.mxu0 0.0
  %241 = vmatprep.subr.mxu0 0.0
  %242 = vmatpush1.msra.mxu0 0.0
  %243 = vmatprep.subr.mxu0 0.0
  %244 = vmatpush1.msra.mxu0 0.0
  %245 = vmatprep.subr.mxu0 0.0
  %246 = vmatpush1.msra.mxu0 0.0
  %247 = vmatprep.subr.mxu0 0.0
  %248 = vmatpush1.msra.mxu0 0.0
  %249 = vmatprep.subr.mxu0 0.0
  %250 = vmatpush1.msra.mxu0 0.0
  %251 = vmatprep.mubr.f32.mxu0 0.0
  %252 = vmatmul.mubr.f32.gmra.mrb[0].mxu0 %v182
  %v253 = vpop.f32.mrb[0].mxu0
  %v254 = vadd.f32 %v174, %v253
  %v255 = vpop.f32.mrb[0].mxu0
  %256 = vmatprep.mubr.f32.mxu0 0.0
  %257 = vmatmul.mubr.f32.gmra.mrb[0].mxu0 %v185
  %v258 = vpop.f32.mrb[0].mxu0
  %v259 = vadd.f32 %v179, %v258
  %v260 = vpop.f32.mrb[0].mxu0
  %261 = vdwg.mxu0
  %v262 = vmul.f32 %v254, 0.5
  %v263 = vmul.f32 %v259, 0.5
  %v264 = vtanh.pop %v262
  %v265 = vtanh.pop %v263
  %v266 = vmul.f32 %v264, 0.5
  %v267 = vmul.f32 %v265, 0.5
  %v268 = vadd.f32 %v266, 0.5
  %v269 = vadd.f32 %v267, 0.5
  %s270 = scalar_lea.vmem %s2, 32
  %v271 = vld [vmem:[%s270] sm:$0xff]
  %v272 = vld [vmem:[%s270 + $0x8] sm:$0xff]
  %s273 = scalar_lea.vmem %s3, 48
  %v274 = vld [vmem:[%s273] sm:$0xff]
  %v275 = vld [vmem:[%s273 + $0x8] sm:$0xff]
  %277 = vset.pattern.permute.xlu0 0
  %278 = vperm.xlu0 %277, %v274
  %v279 = vpop.permute.xlu0 %278
  %282 = vset.pattern.permute.xlu0 0
  %283 = vperm.xlu0 %282, %v275
  %v284 = vpop.permute.xlu0 %283
  %v287 = vsel %vm75, %v271, 0
  %v290 = vsel %vm75, %v272, 0
  %292 = vmatprep.subr.mxu0 0.0
  %293 = vmatpush1.msra.mxu0 %v268
  %294 = vmatprep.subr.mxu0 0.0
  %295 = vmatpush1.msra.mxu0 %v269
  %296 = vmatprep.subr.mxu0 0.0
  %297 = vmatpush1.msra.mxu0 0.0
  %298 = vmatprep.subr.mxu0 0.0
  %299 = vmatpush1.msra.mxu0 0.0
  %300 = vmatprep.subr.mxu0 0.0
  %301 = vmatpush1.msra.mxu0 0.0
  %302 = vmatprep.subr.mxu0 0.0
  %303 = vmatpush1.msra.mxu0 0.0
  %304 = vmatprep.subr.mxu0 0.0
  %305 = vmatpush1.msra.mxu0 0.0
  %306 = vmatprep.subr.mxu0 0.0
  %307 = vmatpush1.msra.mxu0 0.0
  %308 = vmatprep.subr.mxu0 0.0
  %309 = vmatpush1.msra.mxu0 0.0
  %310 = vmatprep.subr.mxu0 0.0
  %311 = vmatpush1.msra.mxu0 0.0
  %312 = vmatprep.subr.mxu0 0.0
  %313 = vmatpush1.msra.mxu0 0.0
  %314 = vmatprep.subr.mxu0 0.0
  %315 = vmatpush1.msra.mxu0 0.0
  %316 = vmatprep.subr.mxu0 0.0
  %317 = vmatpush1.msra.mxu0 0.0
  %318 = vmatprep.subr.mxu0 0.0
  %319 = vmatpush1.msra.mxu0 0.0
  %320 = vmatprep.subr.mxu0 0.0
  %321 = vmatpush1.msra.mxu0 0.0
  %322 = vmatprep.subr.mxu0 0.0
  %323 = vmatpush1.msra.mxu0 0.0
  %324 = vmatprep.subr.mxu0 0.0
  %325 = vmatpush1.msra.mxu0 0.0
  %326 = vmatprep.subr.mxu0 0.0
  %327 = vmatpush1.msra.mxu0 0.0
  %328 = vmatprep.subr.mxu0 0.0
  %329 = vmatpush1.msra.mxu0 0.0
  %330 = vmatprep.subr.mxu0 0.0
  %331 = vmatpush1.msra.mxu0 0.0
  %332 = vmatprep.subr.mxu0 0.0
  %333 = vmatpush1.msra.mxu0 0.0
  %334 = vmatprep.subr.mxu0 0.0
  %335 = vmatpush1.msra.mxu0 0.0
  %336 = vmatprep.subr.mxu0 0.0
  %337 = vmatpush1.msra.mxu0 0.0
  %338 = vmatprep.subr.mxu0 0.0
  %339 = vmatpush1.msra.mxu0 0.0
  %340 = vmatprep.subr.mxu0 0.0
  %341 = vmatpush1.msra.mxu0 0.0
  %342 = vmatprep.subr.mxu0 0.0
  %343 = vmatpush1.msra.mxu0 0.0
  %344 = vmatprep.subr.mxu0 0.0
  %345 = vmatpush1.msra.mxu0 0.0
  %346 = vmatprep.subr.mxu0 0.0
  %347 = vmatpush1.msra.mxu0 0.0
  %348 = vmatprep.subr.mxu0 0.0
  %349 = vmatpush1.msra.mxu0 0.0
  %350 = vmatprep.subr.mxu0 0.0
  %351 = vmatpush1.msra.mxu0 0.0
  %352 = vmatprep.subr.mxu0 0.0
  %353 = vmatpush1.msra.mxu0 0.0
  %354 = vmatprep.subr.mxu0 0.0
  %355 = vmatpush1.msra.mxu0 0.0
  %356 = vmatprep.mubr.f32.mxu0 0.0
  %357 = vmatmul.mubr.f32.gmra.mrb[0].mxu0 %v287
  %v358 = vpop.f32.mrb[0].mxu0
  %v359 = vadd.f32 %v279, %v358
  %v360 = vpop.f32.mrb[0].mxu0
  %361 = vmatprep.mubr.f32.mxu0 0.0
  %362 = vmatmul.mubr.f32.gmra.mrb[0].mxu0 %v290
  %v363 = vpop.f32.mrb[0].mxu0
  %v364 = vadd.f32 %v284, %v363
  %v365 = vpop.f32.mrb[0].mxu0
  %366 = vdwg.mxu0
  %v367 = vmul.f32 %v359, 0.5
  %v368 = vmul.f32 %v364, 0.5
  %v369 = vtanh.pop %v367
  %v370 = vtanh.pop %v368
  %v371 = vmul.f32 %v369, 0.5
  %v372 = vmul.f32 %v370, 0.5
  %v373 = vadd.f32 %v371, 0.5
  %v374 = vadd.f32 %v372, 0.5
  %s375 = scalar_lea.vmem %s2, 48
  %v376 = vld [vmem:[%s375] sm:$0xff]
  %v377 = vld [vmem:[%s375 + $0x8] sm:$0xff]
  %s378 = scalar_lea.vmem %s3, 64
  %v379 = vld [vmem:[%s378] sm:$0xff]
  %v380 = vld [vmem:[%s378 + $0x8] sm:$0xff]
  %382 = vset.pattern.permute.xlu0 0
  %383 = vperm.xlu0 %382, %v379
  %v384 = vpop.permute.xlu0 %383
  %387 = vset.pattern.permute.xlu0 0
  %388 = vperm.xlu0 %387, %v380
  %v389 = vpop.permute.xlu0 %388
  %v392 = vsel %vm75, %v376, 0
  %v395 = vsel %vm75, %v377, 0
  %397 = vmatprep.subr.mxu0 0.0
  %398 = vmatpush1.msra.mxu0 %v373
  %399 = vmatprep.subr.mxu0 0.0
  %400 = vmatpush1.msra.mxu0 %v374
  %401 = vmatprep.subr.mxu0 0.0
  %402 = vmatpush1.msra.mxu0 0.0
  %403 = vmatprep.subr.mxu0 0.0
  %404 = vmatpush1.msra.mxu0 0.0
  %405 = vmatprep.subr.mxu0 0.0
  %406 = vmatpush1.msra.mxu0 0.0
  %407 = vmatprep.subr.mxu0 0.0
  %408 = vmatpush1.msra.mxu0 0.0
  %409 = vmatprep.subr.mxu0 0.0
  %410 = vmatpush1.msra.mxu0 0.0
  %411 = vmatprep.subr.mxu0 0.0
  %412 = vmatpush1.msra.mxu0 0.0
  %413 = vmatprep.subr.mxu0 0.0
  %414 = vmatpush1.msra.mxu0 0.0
  %415 = vmatprep.subr.mxu0 0.0
  %416 = vmatpush1.msra.mxu0 0.0
  %417 = vmatprep.subr.mxu0 0.0
  %418 = vmatpush1.msra.mxu0 0.0
  %419 = vmatprep.subr.mxu0 0.0
  %420 = vmatpush1.msra.mxu0 0.0
  %421 = vmatprep.subr.mxu0 0.0
  %422 = vmatpush1.msra.mxu0 0.0
  %423 = vmatprep.subr.mxu0 0.0
  %424 = vmatpush1.msra.mxu0 0.0
  %425 = vmatprep.subr.mxu0 0.0
  %426 = vmatpush1.msra.mxu0 0.0
  %427 = vmatprep.subr.mxu0 0.0
  %428 = vmatpush1.msra.mxu0 0.0
  %429 = vmatprep.subr.mxu0 0.0
  %430 = vmatpush1.msra.mxu0 0.0
  %431 = vmatprep.subr.mxu0 0.0
  %432 = vmatpush1.msra.mxu0 0.0
  %433 = vmatprep.subr.mxu0 0.0
  %434 = vmatpush1.msra.mxu0 0.0
  %435 = vmatprep.subr.mxu0 0.0
  %436 = vmatpush1.msra.mxu0 0.0
  %437 = vmatprep.subr.mxu0 0.0
  %438 = vmatpush1.msra.mxu0 0.0
  %439 = vmatprep.subr.mxu0 0.0
  %440 = vmatpush1.msra.mxu0 0.0
  %441 = vmatprep.subr.mxu0 0.0
  %442 = vmatpush1.msra.mxu0 0.0
  %443 = vmatprep.subr.mxu0 0.0
  %444 = vmatpush1.msra.mxu0 0.0
  %445 = vmatprep.subr.mxu0 0.0
  %446 = vmatpush1.msra.mxu0 0.0
  %447 = vmatprep.subr.mxu0 0.0
  %448 = vmatpush1.msra.mxu0 0.0
  %449 = vmatprep.subr.mxu0 0.0
  %450 = vmatpush1.msra.mxu0 0.0
  %451 = vmatprep.subr.mxu0 0.0
  %452 = vmatpush1.msra.mxu0 0.0
  %453 = vmatprep.subr.mxu0 0.0
  %454 = vmatpush1.msra.mxu0 0.0
  %455 = vmatprep.subr.mxu0 0.0
  %456 = vmatpush1.msra.mxu0 0.0
  %457 = vmatprep.subr.mxu0 0.0
  %458 = vmatpush1.msra.mxu0 0.0
  %459 = vmatprep.subr.mxu0 0.0
  %460 = vmatpush1.msra.mxu0 0.0
  %461 = vmatprep.mubr.f32.mxu0 0.0
  %462 = vmatmul.mubr.f32.gmra.mrb[0].mxu0 %v392
  %v463 = vpop.f32.mrb[0].mxu0
  %v464 = vadd.f32 %v384, %v463
  %v465 = vpop.f32.mrb[0].mxu0
  %466 = vmatprep.mubr.f32.mxu0 0.0
  %467 = vmatmul.mubr.f32.gmra.mrb[0].mxu0 %v395
  %v468 = vpop.f32.mrb[0].mxu0
  %v469 = vadd.f32 %v389, %v468
  %v470 = vpop.f32.mrb[0].mxu0
  %471 = vdwg.mxu0
  %v472 = vmul.f32 %v464, 0.5
  %v473 = vmul.f32 %v469, 0.5
  %v474 = vtanh.pop %v472
  %v475 = vtanh.pop %v473
  %v476 = vmul.f32 %v474, 0.5
  %v477 = vmul.f32 %v475, 0.5
  %v478 = vadd.f32 %v476, 0.5
  %v479 = vadd.f32 %v477, 0.5
  %s480 = scalar_lea.vmem %s2, 64
  %v481 = vld [vmem:[%s480] sm:$0xff]
  %v482 = vld [vmem:[%s480 + $0x8] sm:$0xff]
  %s483 = scalar_lea.vmem %s3, 80
  %v484 = vld [vmem:[%s483] sm:$0xff]
  %v485 = vld [vmem:[%s483 + $0x8] sm:$0xff]
  %487 = vset.pattern.permute.xlu0 0
  %488 = vperm.xlu0 %487, %v484
  %v489 = vpop.permute.xlu0 %488
  %492 = vset.pattern.permute.xlu0 0
  %493 = vperm.xlu0 %492, %v485
  %v494 = vpop.permute.xlu0 %493
  %v496 = vsel %vm75, %v481, 0
  %v499 = vsel %vm75, %v482, 0
  %501 = vmatprep.subr.mxu0 0.0
  %502 = vmatpush1.msra.mxu0 %v478
  %503 = vmatprep.subr.mxu0 0.0
  %504 = vmatpush1.msra.mxu0 %v479
  %505 = vmatprep.subr.mxu0 0.0
  %506 = vmatpush1.msra.mxu0 0.0
  %507 = vmatprep.subr.mxu0 0.0
  %508 = vmatpush1.msra.mxu0 0.0
  %509 = vmatprep.subr.mxu0 0.0
  %510 = vmatpush1.msra.mxu0 0.0
  %511 = vmatprep.subr.mxu0 0.0
  %512 = vmatpush1.msra.mxu0 0.0
  %513 = vmatprep.subr.mxu0 0.0
  %514 = vmatpush1.msra.mxu0 0.0
  %515 = vmatprep.subr.mxu0 0.0
  %516 = vmatpush1.msra.mxu0 0.0
  %517 = vmatprep.subr.mxu0 0.0
  %518 = vmatpush1.msra.mxu0 0.0
  %519 = vmatprep.subr.mxu0 0.0
  %520 = vmatpush1.msra.mxu0 0.0
  %521 = vmatprep.subr.mxu0 0.0
  %522 = vmatpush1.msra.mxu0 0.0
  %523 = vmatprep.subr.mxu0 0.0
  %524 = vmatpush1.msra.mxu0 0.0
  %525 = vmatprep.subr.mxu0 0.0
  %526 = vmatpush1.msra.mxu0 0.0
  %527 = vmatprep.subr.mxu0 0.0
  %528 = vmatpush1.msra.mxu0 0.0
  %529 = vmatprep.subr.mxu0 0.0
  %530 = vmatpush1.msra.mxu0 0.0
  %531 = vmatprep.subr.mxu0 0.0
  %532 = vmatpush1.msra.mxu0 0.0
  %533 = vmatprep.subr.mxu0 0.0
  %534 = vmatpush1.msra.mxu0 0.0
  %535 = vmatprep.subr.mxu0 0.0
  %536 = vmatpush1.msra.mxu0 0.0
  %537 = vmatprep.subr.mxu0 0.0
  %538 = vmatpush1.msra.mxu0 0.0
  %539 = vmatprep.subr.mxu0 0.0
  %540 = vmatpush1.msra.mxu0 0.0
  %541 = vmatprep.subr.mxu0 0.0
  %542 = vmatpush1.msra.mxu0 0.0
  %543 = vmatprep.subr.mxu0 0.0
  %544 = vmatpush1.msra.mxu0 0.0
  %545 = vmatprep.subr.mxu0 0.0
  %546 = vmatpush1.msra.mxu0 0.0
  %547 = vmatprep.subr.mxu0 0.0
  %548 = vmatpush1.msra.mxu0 0.0
  %549 = vmatprep.subr.mxu0 0.0
  %550 = vmatpush1.msra.mxu0 0.0
  %551 = vmatprep.subr.mxu0 0.0
  %552 = vmatpush1.msra.mxu0 0.0
  %553 = vmatprep.subr.mxu0 0.0
  %554 = vmatpush1.msra.mxu0 0.0
  %555 = vmatprep.subr.mxu0 0.0
  %556 = vmatpush1.msra.mxu0 0.0
  %557 = vmatprep.subr.mxu0 0.0
  %558 = vmatpush1.msra.mxu0 0.0
  %559 = vmatprep.subr.mxu0 0.0
  %560 = vmatpush1.msra.mxu0 0.0
  %561 = vmatprep.subr.mxu0 0.0
  %562 = vmatpush1.msra.mxu0 0.0
  %563 = vmatprep.subr.mxu0 0.0
  %564 = vmatpush1.msra.mxu0 0.0
  %565 = vmatprep.mubr.f32.mxu0 0.0
  %566 = vmatmul.mubr.f32.gmra.mrb[0].mxu0 %v496
  %v567 = vpop.f32.mrb[0].mxu0
  %v568 = vadd.f32 %v489, %v567
  %v569 = vpop.f32.mrb[0].mxu0
  %570 = vmatprep.mubr.f32.mxu0 0.0
  %571 = vmatmul.mubr.f32.gmra.mrb[0].mxu0 %v499
  %v572 = vpop.f32.mrb[0].mxu0
  %v573 = vpop.f32.mrb[0].mxu0
  %574 = vdwg.mxu0
  %575 = vst [vmem:[%s4] sm:$0x1] %v568
  // Predicated region
  $region18: #{model2_forward.1} parent=0 // pred_check
    _
  $region19: #{model2_forward.1} parent=0 // pred_check_branch
    %577 = sbr.rel (0) target = $region21
  $region20: #{model2_forward.1} parent=0 // pred_region
    _
  $region21: #{model2_forward.1} parent=0 // pred_fallthru
    _
  // Predicated region
  $region22: #{model2_forward.1} parent=0 // pred_check
    _
  $region23: #{model2_forward.1} parent=0 // pred_check_branch
    %579 = sbr.rel (0) target = $region25
  $region24: #{model2_forward.1} parent=0 // pred_region
    _
  $region25: #{model2_forward.1} parent=0 // pred_fallthru
    _

</llo_original>
